<compile_context>
chip_gen: v6e
topology: v6e:2x2x1
jax: 0.10.0
libtpu: 0.0.40
codegen_flags: <defaults>
</compile_context>

<pallas_src>
import functools

import jax
import jax.numpy as jnp
from jax.experimental import pallas as pl
from jax.experimental.pallas import tpu as pltpu


def _round_up(x, m):
    return ((x + m - 1) // m) * m


# ---------------------------------------------------------------------------
# Kernel: one batch tile, both Q heads, single lane-dense (Bt, 128) store.
# ---------------------------------------------------------------------------
def qnetwork_kernel(xu_ref, w_ref, b_ref, out_ref, *, kp, off_w2, off_w3, width):
    xu = xu_ref[...]                                  # (Bt, kp) bf16

    # Static views into the packed weight slab (row offsets 16-aligned for bf16).
    w1 = w_ref[0:kp, :]                               # fused [W1 | W4]
    w2 = w_ref[off_w2:off_w2 + width, :]              # block-diag [W2 0; 0 W5]
    w3 = w_ref[off_w3:off_w3 + width, 0:128]          # block-diag [w3 0; 0 w6], 128 lanes

    b1 = b_ref[0:1, :]                                # f32 biases
    b2 = b_ref[1:2, :]
    b3 = b_ref[2:3, 0:128]

    # Layer 1: xu = concat(state, action) done in the wrapper -> one MXU chain.
    h = jnp.dot(xu, w1, preferred_element_type=jnp.float32) + b1
    h = jnp.maximum(h, 0.0)
    # Layer 2 (block-diagonal fused weight keeps the two heads independent).
    h = jnp.dot(h.astype(jnp.bfloat16), w2, preferred_element_type=jnp.float32) + b2
    h = jnp.maximum(h, 0.0)
    # Layer 3: 128-lane output; cols 0/1 are q1/q2, remaining cols exact zeros.
    out_ref[...] = (jnp.dot(h.astype(jnp.bfloat16), w3,
                            preferred_element_type=jnp.float32) + b3)


# ---------------------------------------------------------------------------
# Parameter packing: 12 tensors -> 1 bf16 weight slab + 1 f32 bias slab (once).
# ---------------------------------------------------------------------------
def pack_qnetwork_params(params, num_inputs, num_actions, hidden_dim,
                         *, param_dtype=jnp.bfloat16):
    (w1, b1, w2, b2, w3, b3, w4, b4, w5, b5, w6, b6) = params
    h = hidden_dim
    h2 = 2 * h
    d_in = num_inputs + num_actions
    width = _round_up(max(h2, 2), 128)          # lane-dense fused width
    kp = _round_up(d_in, 16)                    # bf16 sublane-tile aligned

    def pad2(x, rows, cols):
        return jnp.pad(x, ((0, rows - x.shape[0]), (0, cols - x.shape[1])))

    zhh = jnp.zeros((h, h), jnp.float32)
    zh1 = jnp.zeros((h, 1), jnp.float32)

    w1f = jnp.concatenate([w1, w4], axis=1)                 # (d_in, 2H)
    w2f = jnp.block([[w2, zhh], [zhh, w5]])                 # (2H, 2H)
    w3f = jnp.block([[w3, zh1], [zh1, w6]])                 # (2H, 2)

    wslab = jnp.concatenate([
        pad2(w1f, kp, width),
        pad2(w2f, width, width),
        pad2(w3f, width, width),                            # only cols 0:128 read
    ], axis=0).astype(param_dtype)                          # (kp + 2W, W) bf16

    bslab = jnp.zeros((8, width), jnp.float32)              # keep biases exact f32
    bslab = bslab.at[0, :h2].set(jnp.concatenate([b1, b4], axis=1)[0])
    bslab = bslab.at[1, :h2].set(jnp.concatenate([b2, b5], axis=1)[0])
    bslab = bslab.at[2, :2].set(jnp.concatenate([b3, b6], axis=1)[0])

    offsets = dict(kp=kp, off_w2=kp, off_w3=kp + width, width=width)
    return wslab, bslab, offsets


# ---------------------------------------------------------------------------
# Forward wrapper: batch-gridded pallas_call.
# ---------------------------------------------------------------------------
def make_qnetwork_forward(offsets, *, block_b=1024, single_buffer_params=True,
                          act_dtype=jnp.bfloat16):
    kp = offsets["kp"]
    width = offsets["width"]
    out_w = 128
    kernel = functools.partial(qnetwork_kernel, kp=kp, off_w2=offsets["off_w2"],
                               off_w3=offsets["off_w3"], width=width)

    @jax.jit
    def forward(state, action, wslab, bslab):
        batch = state.shape[0]
        xu = jnp.concatenate([state, action], axis=1)        # (B, d_in)
        d_in = xu.shape[1]

        # Balanced batch tiles (amortize per-grid-step overhead, avoid 2x padding).
        num_tiles = max(1, -(-batch // block_b))
        bt = _round_up(-(-batch // num_tiles), 16)
        bp = bt * num_tiles
        xu = jnp.pad(xu, ((0, bp - batch), (0, kp - d_in))).astype(act_dtype)

        if single_buffer_params:
            # Constant index_map -> no re-DMA; single-buffer to halve VMEM use.
            wspec = pl.BlockSpec(wslab.shape, lambda i: (0, 0),
                                 pipeline_mode=pl.Buffered(1))
            bspec = pl.BlockSpec(bslab.shape, lambda i: (0, 0),
                                 pipeline_mode=pl.Buffered(1))
            pbufs = 1
        else:
            wspec = pl.BlockSpec(wslab.shape, lambda i: (0, 0))
            bspec = pl.BlockSpec(bslab.shape, lambda i: (0, 0))
            pbufs = 2

        param_bytes = (wslab.size * wslab.dtype.itemsize
                       + bslab.size * bslab.dtype.itemsize)
        # VMEM budget: params (+buffering), double-buffered IO tiles, activations.
        vmem_need = (pbufs * param_bytes
                     + 2 * bt * kp * xu.dtype.itemsize
                     + 2 * bt * out_w * 4
                     + 4 * bt * width * 4
                     + (2 << 20))
        vmem_limit = int(min(max(vmem_need, 32 << 20), 64 << 20))  # v7x-safe cap

        cost = pl.CostEstimate(
            flops=2 * bp * (kp * width + width * width + width * out_w),
            transcendentals=0,
            bytes_accessed=(param_bytes + bp * kp * xu.dtype.itemsize
                            + bp * out_w * 4))

        out = pl.pallas_call(
            kernel,
            out_shape=jax.ShapeDtypeStruct((bp, out_w), jnp.float32),
            grid=(num_tiles,),
            in_specs=[
                pl.BlockSpec((bt, kp), lambda i: (i, 0)),
                wspec,                                      # resident params
                bspec,
            ],
            out_specs=pl.BlockSpec((bt, out_w), lambda i: (i, 0)),
            compiler_params=pltpu.CompilerParams(
                dimension_semantics=("parallel",),
                vmem_limit_bytes=vmem_limit),
            cost_estimate=cost,
        )(xu, wslab, bslab)

        return out[:batch, 0:1], out[:batch, 1:2]           # q1, q2

    return forward


# ---------------------------------------------------------------------------
# Deterministic init (mirrors weights_init_: Xavier-uniform W, zero bias).
# Weights stored as (in, out) = torch Linear weight transposed.
# ---------------------------------------------------------------------------
def xavier_uniform(key, fan_in, fan_out):
    bound = jnp.sqrt(6.0 / (fan_in + fan_out))
    return jax.random.uniform(
        key, (fan_in, fan_out), minval=-bound, maxval=bound, dtype=jnp.float32)


def init_qnetwork_params(key, num_inputs, num_actions, hidden_dim):
    d_in = num_inputs + num_actions
    keys = jax.random.split(key, 6)
    w1 = xavier_uniform(keys[0], d_in, hidden_dim)
    w2 = xavier_uniform(keys[1], hidden_dim, hidden_dim)
    w3 = xavier_uniform(keys[2], hidden_dim, 1)
    w4 = xavier_uniform(keys[3], d_in, hidden_dim)
    w5 = xavier_uniform(keys[4], hidden_dim, hidden_dim)
    w6 = xavier_uniform(keys[5], hidden_dim, 1)
    z = lambda n: jnp.zeros((1, n), dtype=jnp.float32)
    return (w1, z(hidden_dim), w2, z(hidden_dim), w3, z(1),
            w4, z(hidden_dim), w5, z(hidden_dim), w6, z(1))


# Pure-JAX reference (unfused, f32) for correctness check.
def qnetwork_ref(state, action, params):
    (w1, b1, w2, b2, w3, b3, w4, b4, w5, b5, w6, b6) = params
    xu = jnp.concatenate([state, action], axis=1)
    x1 = jnp.maximum(xu @ w1 + b1, 0.0)
    x1 = jnp.maximum(x1 @ w2 + b2, 0.0)
    x1 = x1 @ w3 + b3
    x2 = jnp.maximum(xu @ w4 + b4, 0.0)
    x2 = jnp.maximum(x2 @ w5 + b5, 0.0)
    x2 = x2 @ w6 + b6
    return x1, x2


if __name__ == "__main__":
    num_inputs, num_actions, hidden_dim = 24, 8, 32
    batch = 8

    key = jax.random.PRNGKey(0)
    k_state, k_action, k_params = jax.random.split(key, 3)

    state = jax.random.normal(k_state, (batch, num_inputs), dtype=jnp.float32)
    action = jax.random.normal(k_action, (batch, num_actions), dtype=jnp.float32)
    params = init_qnetwork_params(k_params, num_inputs, num_actions, hidden_dim)

    # One-time parameter packing (outside the hot path).
    wslab, bslab, offsets = pack_qnetwork_params(
        params, num_inputs, num_actions, hidden_dim)
    wslab, bslab = jax.block_until_ready((wslab, bslab))

    def run(single_buffer_params):
        fwd = make_qnetwork_forward(offsets,
                                    single_buffer_params=single_buffer_params)
        q1, q2 = fwd(state, action, wslab, bslab)
        jax.block_until_ready((q1, q2))
        return q1, q2

    try:
        q1, q2 = run(True)
    except Exception:
        # Fallback if pipeline_mode=pl.Buffered(1) is unsupported in this jax.
        q1, q2 = run(False)

    r1, r2 = qnetwork_ref(state, action, params)
    assert q1.shape == (batch, 1) and q2.shape == (batch, 1)
    # bf16 params/activations (f32 accumulation) -> relaxed tolerance vs f32 ref.
    assert jnp.allclose(q1, r1, atol=5e-2, rtol=5e-2)
    assert jnp.allclose(q2, r2, atol=5e-2, rtol=5e-2)

    print("KERNEL_OK")
</pallas_src>

<mosaic_0001>
module attributes {stable_mosaic.version = 11 : i64} {
  func.func @qnetwork_kernel(%arg0: i32, %arg1: memref<16x32xbf16, #tpu.memory_space<vmem>>, %arg2: memref<288x128xbf16, #tpu.memory_space<vmem>>, %arg3: memref<8x128xf32, #tpu.memory_space<vmem>>, %arg4: memref<16x128xf32, #tpu.memory_space<vmem>>) attributes {dimension_semantics = [#tpu.dimension_semantics<parallel>], iteration_bounds = array<i64: 1>, scalar_prefetch = 0 : i64, scratch_operands = 0 : i64, tpu.core_type = #tpu.core_type<tc>, window_params = [{transform_indices = @transform_0, window_bounds = array<i64: 16, 32>}, {pipeline_mode = #tpu.pipeline_mode<synchronous>, transform_indices = @transform_1, window_bounds = array<i64: 288, 128>}, {pipeline_mode = #tpu.pipeline_mode<synchronous>, transform_indices = @transform_2, window_bounds = array<i64: 8, 128>}, {transform_indices = @transform_3, window_bounds = array<i64: 16, 128>}]} {
    %c0 = arith.constant 0 : index
    %c0_0 = arith.constant 0 : index
    %0 = vector.load %arg1[%c0, %c0_0] : memref<16x32xbf16, #tpu.memory_space<vmem>>, vector<16x32xbf16>
    %c0_1 = arith.constant 0 : index
    %c0_2 = arith.constant 0 : index
    %1 = vector.load %arg2[%c0_1, %c0_2] : memref<288x128xbf16, #tpu.memory_space<vmem>>, vector<32x128xbf16>
    %c32 = arith.constant 32 : index
    %c0_3 = arith.constant 0 : index
    %2 = vector.load %arg2[%c32, %c0_3] : memref<288x128xbf16, #tpu.memory_space<vmem>>, vector<128x128xbf16>
    %c160 = arith.constant 160 : index
    %c0_4 = arith.constant 0 : index
    %3 = vector.load %arg2[%c160, %c0_4] : memref<288x128xbf16, #tpu.memory_space<vmem>>, vector<128x128xbf16>
    %c0_5 = arith.constant 0 : index
    %c0_6 = arith.constant 0 : index
    %4 = vector.load %arg3[%c0_5, %c0_6] : memref<8x128xf32, #tpu.memory_space<vmem>>, vector<1x128xf32>
    %c1 = arith.constant 1 : index
    %c0_7 = arith.constant 0 : index
    %5 = vector.load %arg3[%c1, %c0_7] : memref<8x128xf32, #tpu.memory_space<vmem>>, vector<1x128xf32>
    %c2 = arith.constant 2 : index
    %c0_8 = arith.constant 0 : index
    %6 = vector.load %arg3[%c2, %c0_8] : memref<8x128xf32, #tpu.memory_space<vmem>>, vector<1x128xf32>
    %cst = arith.constant dense<0.000000e+00> : vector<16x128xf32>
    %7 = tpu.matmul %0, %1, %cst {dimension_numbers = #tpu.dot_dimension_numbers<[1], [0], [0], [1], [0, 0, 1, 1], [], []>} : vector<16x32xbf16>, vector<32x128xbf16>, vector<16x128xf32> -> vector<16x128xf32>
    %8 = vector.broadcast %4 : vector<1x128xf32> to vector<16x128xf32>
    %9 = arith.addf %7, %8 : vector<16x128xf32>
    %cst_9 = arith.constant 0.000000e+00 : f32
    %10 = vector.broadcast %cst_9 : f32 to vector<16x128xf32>
    %11 = arith.maximumf %9, %10 : vector<16x128xf32>
    %12 = arith.truncf %11 : vector<16x128xf32> to vector<16x128xbf16>
    %cst_10 = arith.constant dense<0.000000e+00> : vector<16x128xf32>
    %13 = tpu.matmul %12, %2, %cst_10 {dimension_numbers = #tpu.dot_dimension_numbers<[1], [0], [0], [1], [0, 0, 1, 1], [], []>} : vector<16x128xbf16>, vector<128x128xbf16>, vector<16x128xf32> -> vector<16x128xf32>
    %14 = vector.broadcast %5 : vector<1x128xf32> to vector<16x128xf32>
    %15 = arith.addf %13, %14 : vector<16x128xf32>
    %cst_11 = arith.constant 0.000000e+00 : f32
    %16 = vector.broadcast %cst_11 : f32 to vector<16x128xf32>
    %17 = arith.maximumf %15, %16 : vector<16x128xf32>
    %18 = arith.truncf %17 : vector<16x128xf32> to vector<16x128xbf16>
    %cst_12 = arith.constant dense<0.000000e+00> : vector<16x128xf32>
    %19 = tpu.matmul %18, %3, %cst_12 {dimension_numbers = #tpu.dot_dimension_numbers<[1], [0], [0], [1], [0, 0, 1, 1], [], []>} : vector<16x128xbf16>, vector<128x128xbf16>, vector<16x128xf32> -> vector<16x128xf32>
    %20 = vector.broadcast %6 : vector<1x128xf32> to vector<16x128xf32>
    %21 = arith.addf %19, %20 : vector<16x128xf32>
    %c0_13 = arith.constant 0 : index
    %c0_14 = arith.constant 0 : index
    %22 = vector.load %arg4[%c0_13, %c0_14] : memref<16x128xf32, #tpu.memory_space<vmem>>, vector<16x128xf32>
    tpu.vector_store %arg4[%c0_13, %c0_14], %21 {strides = array<i32>} : memref<16x128xf32, #tpu.memory_space<vmem>>, vector<16x128xf32>,
    return
  }
  func.func @transform_0(%arg0: i32) -> (i32, i32) {
    %c0_i32 = arith.constant 0 : i32
    %c0_i32_0 = arith.constant 0 : i32
    return %arg0, %c0_i32 : i32, i32
  }
  func.func @transform_1(%arg0: i32) -> (i32, i32) {
    %c0_i32 = arith.constant 0 : i32
    %c0_i32_0 = arith.constant 0 : i32
    %c0_i32_1 = arith.constant 0 : i32
    return %c0_i32, %c0_i32_0 : i32, i32
  }
  func.func @transform_2(%arg0: i32) -> (i32, i32) {
    %c0_i32 = arith.constant 0 : i32
    %c0_i32_0 = arith.constant 0 : i32
    %c0_i32_1 = arith.constant 0 : i32
    return %c0_i32, %c0_i32_0 : i32, i32
  }
  func.func @transform_3(%arg0: i32) -> (i32, i32) {
    %c0_i32 = arith.constant 0 : i32
    %c0_i32_0 = arith.constant 0 : i32
    return %arg0, %c0_i32 : i32, i32
  }
}

module attributes {stable_mosaic.version = 11 : i64} {
  func.func @qnetwork_kernel(%arg0: i32, %arg1: memref<16x32xbf16, #tpu.memory_space<vmem>>, %arg2: memref<288x128xbf16, #tpu.memory_space<vmem>>, %arg3: memref<8x128xf32, #tpu.memory_space<vmem>>, %arg4: memref<16x128xf32, #tpu.memory_space<vmem>>) attributes {dimension_semantics = [#tpu.dimension_semantics<parallel>], iteration_bounds = array<i64: 1>, scalar_prefetch = 0 : i64, scratch_operands = 0 : i64, tpu.core_type = #tpu.core_type<tc>, window_params = [{transform_indices = @transform_0, window_bounds = array<i64: 16, 32>}, {pipeline_mode = #tpu.pipeline_mode<synchronous>, transform_indices = @transform_1, window_bounds = array<i64: 288, 128>}, {pipeline_mode = #tpu.pipeline_mode<synchronous>, transform_indices = @transform_2, window_bounds = array<i64: 8, 128>}, {transform_indices = @transform_3, window_bounds = array<i64: 16, 128>}]} {
    %c0 = arith.constant 0 : index
    %c0_0 = arith.constant 0 : index
    %0 = vector.load %arg1[%c0, %c0_0] : memref<16x32xbf16, #tpu.memory_space<vmem>>, vector<16x32xbf16>
    %c0_1 = arith.constant 0 : index
    %c0_2 = arith.constant 0 : index
    %1 = vector.load %arg2[%c0_1, %c0_2] : memref<288x128xbf16, #tpu.memory_space<vmem>>, vector<32x128xbf16>
    %c32 = arith.constant 32 : index
    %c0_3 = arith.constant 0 : index
    %2 = vector.load %arg2[%c32, %c0_3] : memref<288x128xbf16, #tpu.memory_space<vmem>>, vector<128x128xbf16>
    %c160 = arith.constant 160 : index
    %c0_4 = arith.constant 0 : index
    %3 = vector.load %arg2[%c160, %c0_4] : memref<288x128xbf16, #tpu.memory_space<vmem>>, vector<128x128xbf16>
    %c0_5 = arith.constant 0 : index
    %c0_6 = arith.constant 0 : index
    %4 = vector.load %arg3[%c0_5, %c0_6] : memref<8x128xf32, #tpu.memory_space<vmem>>, vector<1x128xf32>
    %c1 = arith.constant 1 : index
    %c0_7 = arith.constant 0 : index
    %5 = vector.load %arg3[%c1, %c0_7] : memref<8x128xf32, #tpu.memory_space<vmem>>, vector<1x128xf32>
    %c2 = arith.constant 2 : index
    %c0_8 = arith.constant 0 : index
    %6 = vector.load %arg3[%c2, %c0_8] : memref<8x128xf32, #tpu.memory_space<vmem>>, vector<1x128xf32>
    %cst = arith.constant dense<0.000000e+00> : vector<16x128xf32>
    %7 = tpu.matmul %0, %1, %cst {dimension_numbers = #tpu.dot_dimension_numbers<[1], [0], [0], [1], [0, 0, 1, 1], [], []>} : vector<16x32xbf16>, vector<32x128xbf16>, vector<16x128xf32> -> vector<16x128xf32>
    %8 = vector.broadcast %4 : vector<1x128xf32> to vector<16x128xf32>
    %9 = arith.addf %7, %8 : vector<16x128xf32>
    %cst_9 = arith.constant 0.000000e+00 : f32
    %10 = vector.broadcast %cst_9 : f32 to vector<16x128xf32>
    %11 = arith.maximumf %9, %10 : vector<16x128xf32>
    %12 = arith.truncf %11 : vector<16x128xf32> to vector<16x128xbf16>
    %cst_10 = arith.constant dense<0.000000e+00> : vector<16x128xf32>
    %13 = tpu.matmul %12, %2, %cst_10 {dimension_numbers = #tpu.dot_dimension_numbers<[1], [0], [0], [1], [0, 0, 1, 1], [], []>} : vector<16x128xbf16>, vector<128x128xbf16>, vector<16x128xf32> -> vector<16x128xf32>
    %14 = vector.broadcast %5 : vector<1x128xf32> to vector<16x128xf32>
    %15 = arith.addf %13, %14 : vector<16x128xf32>
    %cst_11 = arith.constant 0.000000e+00 : f32
    %16 = vector.broadcast %cst_11 : f32 to vector<16x128xf32>
    %17 = arith.maximumf %15, %16 : vector<16x128xf32>
    %18 = arith.truncf %17 : vector<16x128xf32> to vector<16x128xbf16>
    %cst_12 = arith.constant dense<0.000000e+00> : vector<16x128xf32>
    %19 = tpu.matmul %18, %3, %cst_12 {dimension_numbers = #tpu.dot_dimension_numbers<[1], [0], [0], [1], [0, 0, 1, 1], [], []>} : vector<16x128xbf16>, vector<128x128xbf16>, vector<16x128xf32> -> vector<16x128xf32>
    %20 = vector.broadcast %6 : vector<1x128xf32> to vector<16x128xf32>
    %21 = arith.addf %19, %20 : vector<16x128xf32>
    %c0_13 = arith.constant 0 : index
    %c0_14 = arith.constant 0 : index
    %22 = vector.load %arg4[%c0_13, %c0_14] : memref<16x128xf32, #tpu.memory_space<vmem>>, vector<16x128xf32>
    tpu.vector_store %arg4[%c0_13, %c0_14], %21 {strides = array<i32>} : memref<16x128xf32, #tpu.memory_space<vmem>>, vector<16x128xf32>,
    return
  }
  func.func @transform_0(%arg0: i32) -> (i32, i32) {
    %c0_i32 = arith.constant 0 : i32
    %c0_i32_0 = arith.constant 0 : i32
    return %arg0, %c0_i32 : i32, i32
  }
  func.func @transform_1(%arg0: i32) -> (i32, i32) {
    %c0_i32 = arith.constant 0 : i32
    %c0_i32_0 = arith.constant 0 : i32
    %c0_i32_1 = arith.constant 0 : i32
    return %c0_i32, %c0_i32_0 : i32, i32
  }
  func.func @transform_2(%arg0: i32) -> (i32, i32) {
    %c0_i32 = arith.constant 0 : i32
    %c0_i32_0 = arith.constant 0 : i32
    %c0_i32_1 = arith.constant 0 : i32
    return %c0_i32, %c0_i32_0 : i32, i32
  }
  func.func @transform_3(%arg0: i32) -> (i32, i32) {
    %c0_i32 = arith.constant 0 : i32
    %c0_i32_0 = arith.constant 0 : i32
    return %arg0, %c0_i32 : i32, i32
  }
}

</mosaic_0001>

<llo_original>
// kernel: forward.1
$region0: #{forward.1}
  #allocation0 [shape = 'u32[]', space=smem, size = 0x4, offset = 0x4, fixed_abs, tag = 'smem constant byte address 0x4 - core index']
  #allocation1 [shape = 'u32[144,128]{1,0:T(1,128)}', space=vmem, size = 0x12000, scoped, tag = 'internal scratch']
  %s0 = inlined_call_operand.vmem [shape: bf16[16,32], index: 0, kind: input, shape index: {}]
  %s1 = inlined_call_operand.hbm [shape: bf16[288,128], index: 1, kind: input, shape index: {}]
  %s2 = inlined_call_operand.vmem [shape: f32[8,128], index: 2, kind: input, shape index: {}]
  %s3 = inlined_call_operand.vmem [shape: f32[16,128], index: 3, kind: output, shape index: {}]
  %s4 = sld [smem:[#allocation0]]
  $region26: #{forward.1} parent=0
    _
  %s6 = ssub.s32 1, %s4
  %s7 = scalar_select 0, %s6, %s4
  $region1: #{forward.1} parent=0
    #allocation2 [shape = 'u8[73728]{0}', space=vmem, size = 0x12000, scoped, tag = 'input window, operand 1, single buffered']
    #allocation3 [shape = 's32[1]{0}', space=sflag, size = 0x4, scoped, tag = 'scoped memory for forward.1']
    %8 = vsyncpa [#allocation3], 0
    // Predicated region
    $region2: #{forward.1} parent=1 // pred_check
      _
    $region3: #{forward.1} parent=1 // pred_check_branch
      %10 = sbr.rel (0) target = $region5
    $region4: #{forward.1} parent=1 // pred_region
      _
    $region5: #{forward.1} parent=1 // pred_fallthru
      _
    // Predicated region
    $region6: #{forward.1} parent=1 // pred_check
      _
    $region7: #{forward.1} parent=1 // pred_check_branch
      %12 = sbr.rel (0) target = $region9
    $region8: #{forward.1} parent=1 // pred_region
      %s14 = ssub.s32 2304, 2304
      %15 = vsyncadd [#allocation3], %s14
      %s16 = sshll.u32 [#allocation2], 4
      %s17 = int_to_ptr.vmem [resolvable:$true] %s16
      %22 = dma.hbm_to_vmem [thread:$0]  %s1, 2304, %s17, [#allocation3], 64, 64, 4
    $region9: #{forward.1} parent=1 // pred_fallthru
      _
    // Predicated region
    $region10: #{forward.1} parent=1 // pred_check
      _
    $region11: #{forward.1} parent=1 // pred_check_branch
      %24 = sbr.rel (0) target = $region13
    $region12: #{forward.1} parent=1 // pred_region
      _
    $region13: #{forward.1} parent=1 // pred_fallthru
      _
    // Predicated region
    $region14: #{forward.1} parent=1 // pred_check
      _
    $region15: #{forward.1} parent=1 // pred_check_branch
      %26 = sbr.rel (0) target = $region17
    $region16: #{forward.1} parent=1 // pred_region
      %27 = dma.done [#allocation3], 2304
    $region17: #{forward.1} parent=1 // pred_fallthru
      _
    %v29 = vld [vmem:[%s0] sm:$0xf]
    %v30 = vld [vmem:[%s0 + $0x4] sm:$0xf]
    %v31 = vld [vmem:[#allocation2] sm:$0xf]
    %v32 = vld [vmem:[#allocation2 + $0x4] sm:$0xf]
    %v33 = vld [vmem:[#allocation2 + $0x8] sm:$0xf]
    %v34 = vld [vmem:[#allocation2 + $0xc] sm:$0xf]
    %v35 = vld [vmem:[#allocation2 + $0x10] sm:$0xf]
    %v36 = vld [vmem:[#allocation2 + $0x14] sm:$0xf]
    %v37 = vld [vmem:[#allocation2 + $0x18] sm:$0xf]
    %v38 = vld [vmem:[#allocation2 + $0x1c] sm:$0xf]
    %v39 = vld [vmem:[#allocation2 + $0x20] sm:$0xf]
    %v40 = vld [vmem:[#allocation2 + $0x24] sm:$0xf]
    %v41 = vld [vmem:[#allocation2 + $0x28] sm:$0xf]
    %v42 = vld [vmem:[#allocation2 + $0x2c] sm:$0xf]
    %v43 = vld [vmem:[#allocation2 + $0x30] sm:$0xf]
    %v44 = vld [vmem:[#allocation2 + $0x34] sm:$0xf]
    %v45 = vld [vmem:[#allocation2 + $0x38] sm:$0xf]
    %v46 = vld [vmem:[#allocation2 + $0x3c] sm:$0xf]
    %v47 = vld [vmem:[#allocation2 + $0x40] sm:$0xf]
    %v48 = vld [vmem:[#allocation2 + $0x44] sm:$0xf]
    %v49 = vld [vmem:[#allocation2 + $0x48] sm:$0xf]
    %v50 = vld [vmem:[#allocation2 + $0x4c] sm:$0xf]
    %v51 = vld [vmem:[#allocation2 + $0x50] sm:$0xf]
    %v52 = vld [vmem:[#allocation2 + $0x54] sm:$0xf]
    %v53 = vld [vmem:[#allocation2 + $0x58] sm:$0xf]
    %v54 = vld [vmem:[#allocation2 + $0x5c] sm:$0xf]
    %v55 = vld [vmem:[#allocation2 + $0x60] sm:$0xf]
    %v56 = vld [vmem:[#allocation2 + $0x64] sm:$0xf]
    %v57 = vld [vmem:[#allocation2 + $0x68] sm:$0xf]
    %v58 = vld [vmem:[#allocation2 + $0x6c] sm:$0xf]
    %v59 = vld [vmem:[#allocation2 + $0x70] sm:$0xf]
    %v60 = vld [vmem:[#allocation2 + $0x74] sm:$0xf]
    %v61 = vld [vmem:[#allocation2 + $0x78] sm:$0xf]
    %v62 = vld [vmem:[#allocation2 + $0x7c] sm:$0xf]
    %v63 = vld [vmem:[#allocation2 + $0x80] sm:$0xf]
    %v64 = vld [vmem:[#allocation2 + $0x84] sm:$0xf]
    %v65 = vld [vmem:[#allocation2 + $0x88] sm:$0xf]
    %v66 = vld [vmem:[#allocation2 + $0x8c] sm:$0xf]
    %v67 = vld [vmem:[%s2] sm:$0x1]
    %v68 = vld [vmem:[%s2 + $0x1] sm:$0x1]
    %v69 = vld [vmem:[%s2 + $0x2] sm:$0x1]
    %v70 = vlaneseq
    %v71 = vshrl.u32 %v70, 7
    %v72 = vsub.s32 0, %v71
    %v73 = vrot.slane %v67, %v72
    %v76 = vunpack.c.l.b16 %v29
    %v77 = vunpack.c.l.b16 %v30
    %v78 = vpack.c.b16 %v77, %v76
    %v83 = vunpack.c.l.b16 %v31
    %v84 = vunpack.c.l.b16 %v32
    %v85 = vunpack.c.l.b16 %v33
    %v86 = vunpack.c.l.b16 %v34
    %v87 = vpack.c.b16 %v84, %v83
    %v88 = vpack.c.b16 %v86, %v85
    %vm91 = vcmask 261120
    %v93 = vsel %vm91, %v78, 0
    %95 = vmatprep.subr.bf16.mxu0 0
    %96 = vmatpush1.bf16.msra.mxu0 0
    %97 = vmatprep.subr.bf16.mxu0 0
    %98 = vmatpush1.bf16.msra.mxu0 0
    %99 = vmatprep.subr.bf16.mxu0 0
    %100 = vmatpush1.bf16.msra.mxu0 0
    %101 = vmatprep.subr.bf16.mxu0 0
    %102 = vmatpush1.bf16.msra.mxu0 0
    %103 = vmatprep.subr.bf16.mxu0 0
    %104 = vmatpush1.bf16.msra.mxu0 0
    %105 = vmatprep.subr.bf16.mxu0 0
    %106 = vmatpush1.bf16.msra.mxu0 0
    %107 = vmatprep.subr.bf16.mxu0 0
    %108 = vmatpush1.bf16.msra.mxu0 %v88
    %109 = vmatprep.subr.bf16.mxu0 0
    %110 = vmatpush1.bf16.msra.mxu0 %v87
    %111 = vmatprep.subr.bf16.mxu0 0
    %112 = vmatpush2.bf16.msra.mxu0 0
    %113 = vmatprep.subr.bf16.mxu0 0
    %114 = vmatpush2.bf16.msra.mxu0 0
    %115 = vmatprep.subr.bf16.mxu0 0
    %116 = vmatpush2.bf16.msra.mxu0 0
    %117 = vmatprep.subr.bf16.mxu0 0
    %118 = vmatpush2.bf16.msra.mxu0 0
    %119 = vmatprep.subr.bf16.mxu0 0
    %120 = vmatpush2.bf16.msra.mxu0 0
    %121 = vmatprep.subr.bf16.mxu0 0
    %122 = vmatpush2.bf16.msra.mxu0 0
    %123 = vmatprep.subr.bf16.mxu0 0
    %124 = vmatpush2.bf16.msra.mxu0 0
    %125 = vmatprep.subr.bf16.mxu0 0
    %126 = vmatpush2.bf16.msra.mxu0 0
    %127 = vmatprep.mubr.bf16.mxu0 0
    %128 = vmatmul.mubr.bf16.gmra.mxu0 %v93
    %v129 = vpop.f32.mrf.mxu0
    %v130 = vadd.f32 %v73, %v129
    %v131 = vpop.f32.mrf.mxu0
    %v132 = vpop.f32.mrf.mxu0
    %v133 = vadd.f32 %v73, %v132
    %v134 = vpop.f32.mrf.mxu0
    %135 = vdwg.mxu0
    %v136 = vmax.f32 %v130, 0.0
    %v137 = vmax.f32 %v133, 0.0
    %v138 = vpack.c.bf16 %v137, %v136
    %v139 = vlaneseq
    %v140 = vshrl.u32 %v139, 7
    %v141 = vsub.s32 0, %v140
    %v142 = vrot.slane %v68, %v141
    %v159 = vunpack.c.l.b16 %v35
    %v160 = vunpack.c.l.b16 %v36
    %v161 = vunpack.c.l.b16 %v37
    %v162 = vunpack.c.l.b16 %v38
    %v163 = vunpack.c.l.b16 %v39
    %v164 = vunpack.c.l.b16 %v40
    %v165 = vunpack.c.l.b16 %v41
    %v166 = vunpack.c.l.b16 %v42
    %v167 = vunpack.c.l.b16 %v43
    %v168 = vunpack.c.l.b16 %v44
    %v169 = vunpack.c.l.b16 %v45
    %v170 = vunpack.c.l.b16 %v46
    %v171 = vunpack.c.l.b16 %v47
    %v172 = vunpack.c.l.b16 %v48
    %v173 = vunpack.c.l.b16 %v49
    %v174 = vunpack.c.l.b16 %v50
    %v175 = vpack.c.b16 %v160, %v159
    %v176 = vpack.c.b16 %v162, %v161
    %v177 = vpack.c.b16 %v164, %v163
    %v178 = vpack.c.b16 %v166, %v165
    %v179 = vpack.c.b16 %v168, %v167
    %v180 = vpack.c.b16 %v170, %v169
    %v181 = vpack.c.b16 %v172, %v171
    %v182 = vpack.c.b16 %v174, %v173
    %191 = vmatprep.subr.bf16.mxu0 0
    %192 = vmatpush1.bf16.msra.mxu0 %v182
    %193 = vmatprep.subr.bf16.mxu0 0
    %194 = vmatpush1.bf16.msra.mxu0 %v181
    %195 = vmatprep.subr.bf16.mxu0 0
    %196 = vmatpush1.bf16.msra.mxu0 %v180
    %197 = vmatprep.subr.bf16.mxu0 0
    %198 = vmatpush1.bf16.msra.mxu0 %v179
    %199 = vmatprep.subr.bf16.mxu0 0
    %200 = vmatpush1.bf16.msra.mxu0 %v178
    %201 = vmatprep.subr.bf16.mxu0 0
    %202 = vmatpush1.bf16.msra.mxu0 %v177
    %203 = vmatprep.subr.bf16.mxu0 0
    %204 = vmatpush1.bf16.msra.mxu0 %v176
    %205 = vmatprep.subr.bf16.mxu0 0
    %206 = vmatpush1.bf16.msra.mxu0 %v175
    %207 = vmatprep.subr.bf16.mxu0 0
    %208 = vmatpush2.bf16.msra.mxu0 0
    %209 = vmatprep.subr.bf16.mxu0 0
    %210 = vmatpush2.bf16.msra.mxu0 0
    %211 = vmatprep.subr.bf16.mxu0 0
    %212 = vmatpush2.bf16.msra.mxu0 0
    %213 = vmatprep.subr.bf16.mxu0 0
    %214 = vmatpush2.bf16.msra.mxu0 0
    %215 = vmatprep.subr.bf16.mxu0 0
    %216 = vmatpush2.bf16.msra.mxu0 0
    %217 = vmatprep.subr.bf16.mxu0 0
    %218 = vmatpush2.bf16.msra.mxu0 0
    %219 = vmatprep.subr.bf16.mxu0 0
    %220 = vmatpush2.bf16.msra.mxu0 0
    %221 = vmatprep.subr.bf16.mxu0 0
    %222 = vmatpush2.bf16.msra.mxu0 0
    %223 = vmatprep.mubr.bf16.mxu0 0
    %224 = vmatmul.mubr.bf16.gmra.mxu0 %v138
    %v225 = vpop.f32.mrf.mxu0
    %v226 = vadd.f32 %v142, %v225
    %v227 = vpop.f32.mrf.mxu0
    %v228 = vpop.f32.mrf.mxu0
    %v229 = vadd.f32 %v142, %v228
    %v230 = vpop.f32.mrf.mxu0
    %231 = vdwg.mxu0
    %v232 = vmax.f32 %v226, 0.0
    %v233 = vmax.f32 %v229, 0.0
    %v234 = vpack.c.bf16 %v233, %v232
    %v235 = vlaneseq
    %v236 = vshrl.u32 %v235, 7
    %v237 = vsub.s32 0, %v236
    %v238 = vrot.slane %v69, %v237
    %v255 = vunpack.c.l.b16 %v51
    %v256 = vunpack.c.l.b16 %v52
    %v257 = vunpack.c.l.b16 %v53
    %v258 = vunpack.c.l.b16 %v54
    %v259 = vunpack.c.l.b16 %v55
    %v260 = vunpack.c.l.b16 %v56
    %v261 = vunpack.c.l.b16 %v57
    %v262 = vunpack.c.l.b16 %v58
    %v263 = vunpack.c.l.b16 %v59
    %v264 = vunpack.c.l.b16 %v60
    %v265 = vunpack.c.l.b16 %v61
    %v266 = vunpack.c.l.b16 %v62
    %v267 = vunpack.c.l.b16 %v63
    %v268 = vunpack.c.l.b16 %v64
    %v269 = vunpack.c.l.b16 %v65
    %v270 = vunpack.c.l.b16 %v66
    %v271 = vpack.c.b16 %v256, %v255
    %v272 = vpack.c.b16 %v258, %v257
    %v273 = vpack.c.b16 %v260, %v259
    %v274 = vpack.c.b16 %v262, %v261
    %v275 = vpack.c.b16 %v264, %v263
    %v276 = vpack.c.b16 %v266, %v265
    %v277 = vpack.c.b16 %v268, %v267
    %v278 = vpack.c.b16 %v270, %v269
    %287 = vmatprep.subr.bf16.mxu0 0
    %288 = vmatpush1.bf16.msra.mxu0 %v278
    %289 = vmatprep.subr.bf16.mxu0 0
    %290 = vmatpush1.bf16.msra.mxu0 %v277
    %291 = vmatprep.subr.bf16.mxu0 0
    %292 = vmatpush1.bf16.msra.mxu0 %v276
    %293 = vmatprep.subr.bf16.mxu0 0
    %294 = vmatpush1.bf16.msra.mxu0 %v275
    %295 = vmatprep.subr.bf16.mxu0 0
    %296 = vmatpush1.bf16.msra.mxu0 %v274
    %297 = vmatprep.subr.bf16.mxu0 0
    %298 = vmatpush1.bf16.msra.mxu0 %v273
    %299 = vmatprep.subr.bf16.mxu0 0
    %300 = vmatpush1.bf16.msra.mxu0 %v272
    %301 = vmatprep.subr.bf16.mxu0 0
    %302 = vmatpush1.bf16.msra.mxu0 %v271
    %303 = vmatprep.subr.bf16.mxu0 0
    %304 = vmatpush2.bf16.msra.mxu0 0
    %305 = vmatprep.subr.bf16.mxu0 0
    %306 = vmatpush2.bf16.msra.mxu0 0
    %307 = vmatprep.subr.bf16.mxu0 0
    %308 = vmatpush2.bf16.msra.mxu0 0
    %309 = vmatprep.subr.bf16.mxu0 0
    %310 = vmatpush2.bf16.msra.mxu0 0
    %311 = vmatprep.subr.bf16.mxu0 0
    %312 = vmatpush2.bf16.msra.mxu0 0
    %313 = vmatprep.subr.bf16.mxu0 0
    %314 = vmatpush2.bf16.msra.mxu0 0
    %315 = vmatprep.subr.bf16.mxu0 0
    %316 = vmatpush2.bf16.msra.mxu0 0
    %317 = vmatprep.subr.bf16.mxu0 0
    %318 = vmatpush2.bf16.msra.mxu0 0
    %319 = vmatprep.mubr.bf16.mxu0 0
    %320 = vmatmul.mubr.bf16.gmra.mxu0 %v234
    %v321 = vpop.f32.mrf.mxu0
    %v322 = vadd.f32 %v238, %v321
    %v323 = vpop.f32.mrf.mxu0
    %v324 = vpop.f32.mrf.mxu0
    %v325 = vadd.f32 %v238, %v324
    %v326 = vpop.f32.mrf.mxu0
    %327 = vdwg.mxu0
    %328 = vst [vmem:[%s3] sm:$0xff] %v322
    %329 = vst [vmem:[%s3 + $0x8] sm:$0xff] %v325
    // Predicated region
    $region18: #{forward.1} parent=1 // pred_check
      _
    $region19: #{forward.1} parent=1 // pred_check_branch
      %331 = sbr.rel (0) target = $region21
    $region20: #{forward.1} parent=1 // pred_region
      _
    $region21: #{forward.1} parent=1 // pred_fallthru
      _
    // Predicated region
    $region22: #{forward.1} parent=1 // pred_check
      _
    $region23: #{forward.1} parent=1 // pred_check_branch
      %333 = sbr.rel (0) target = $region25
    $region24: #{forward.1} parent=1 // pred_region
      _
    $region25: #{forward.1} parent=1 // pred_fallthru
      _
    %334 = vsyncpa [#allocation3], 1

// kernel: forward.1
$region0: #{forward.1}
  #allocation0 [shape = 'u32[]', space=smem, size = 0x4, offset = 0x4, fixed_abs, tag = 'smem constant byte address 0x4 - core index']
  #allocation1 [shape = 'u32[144,128]{1,0:T(1,128)}', space=vmem, size = 0x12000, scoped, tag = 'internal scratch']
  %s0 = inlined_call_operand.vmem [shape: bf16[16,32], index: 0, kind: input, shape index: {}]
  %s1 = inlined_call_operand.hbm [shape: bf16[288,128], index: 1, kind: input, shape index: {}]
  %s2 = inlined_call_operand.vmem [shape: f32[8,128], index: 2, kind: input, shape index: {}]
  %s3 = inlined_call_operand.vmem [shape: f32[16,128], index: 3, kind: output, shape index: {}]
  %s4 = sld [smem:[#allocation0]]
  $region26: #{forward.1} parent=0
    _
  %s6 = ssub.s32 1, %s4
  %s7 = scalar_select 0, %s6, %s4
  $region1: #{forward.1} parent=0
    #allocation2 [shape = 'u8[73728]{0}', space=vmem, size = 0x12000, scoped, tag = 'input window, operand 1, single buffered']
    #allocation3 [shape = 's32[1]{0}', space=sflag, size = 0x4, scoped, tag = 'scoped memory for forward.1']
    %8 = vsyncpa [#allocation3], 0
    // Predicated region
    $region2: #{forward.1} parent=1 // pred_check
      _
    $region3: #{forward.1} parent=1 // pred_check_branch
      %10 = sbr.rel (0) target = $region5
    $region4: #{forward.1} parent=1 // pred_region
      _
    $region5: #{forward.1} parent=1 // pred_fallthru
      _
    // Predicated region
    $region6: #{forward.1} parent=1 // pred_check
      _
    $region7: #{forward.1} parent=1 // pred_check_branch
      %12 = sbr.rel (0) target = $region9
    $region8: #{forward.1} parent=1 // pred_region
      %s14 = ssub.s32 2304, 2304
      %15 = vsyncadd [#allocation3], %s14
      %s16 = sshll.u32 [#allocation2], 4
      %s17 = int_to_ptr.vmem [resolvable:$true] %s16
      %22 = dma.hbm_to_vmem [thread:$0]  %s1, 2304, %s17, [#allocation3], 64, 64, 4
    $region9: #{forward.1} parent=1 // pred_fallthru
      _
    // Predicated region
    $region10: #{forward.1} parent=1 // pred_check
      _
    $region11: #{forward.1} parent=1 // pred_check_branch
      %24 = sbr.rel (0) target = $region13
    $region12: #{forward.1} parent=1 // pred_region
      _
    $region13: #{forward.1} parent=1 // pred_fallthru
      _
    // Predicated region
    $region14: #{forward.1} parent=1 // pred_check
      _
    $region15: #{forward.1} parent=1 // pred_check_branch
      %26 = sbr.rel (0) target = $region17
    $region16: #{forward.1} parent=1 // pred_region
      %27 = dma.done [#allocation3], 2304
    $region17: #{forward.1} parent=1 // pred_fallthru
      _
    %v29 = vld [vmem:[%s0] sm:$0xf]
    %v30 = vld [vmem:[%s0 + $0x4] sm:$0xf]
    %v31 = vld [vmem:[#allocation2] sm:$0xf]
    %v32 = vld [vmem:[#allocation2 + $0x4] sm:$0xf]
    %v33 = vld [vmem:[#allocation2 + $0x8] sm:$0xf]
    %v34 = vld [vmem:[#allocation2 + $0xc] sm:$0xf]
    %v35 = vld [vmem:[#allocation2 + $0x10] sm:$0xf]
    %v36 = vld [vmem:[#allocation2 + $0x14] sm:$0xf]
    %v37 = vld [vmem:[#allocation2 + $0x18] sm:$0xf]
    %v38 = vld [vmem:[#allocation2 + $0x1c] sm:$0xf]
    %v39 = vld [vmem:[#allocation2 + $0x20] sm:$0xf]
    %v40 = vld [vmem:[#allocation2 + $0x24] sm:$0xf]
    %v41 = vld [vmem:[#allocation2 + $0x28] sm:$0xf]
    %v42 = vld [vmem:[#allocation2 + $0x2c] sm:$0xf]
    %v43 = vld [vmem:[#allocation2 + $0x30] sm:$0xf]
    %v44 = vld [vmem:[#allocation2 + $0x34] sm:$0xf]
    %v45 = vld [vmem:[#allocation2 + $0x38] sm:$0xf]
    %v46 = vld [vmem:[#allocation2 + $0x3c] sm:$0xf]
    %v47 = vld [vmem:[#allocation2 + $0x40] sm:$0xf]
    %v48 = vld [vmem:[#allocation2 + $0x44] sm:$0xf]
    %v49 = vld [vmem:[#allocation2 + $0x48] sm:$0xf]
    %v50 = vld [vmem:[#allocation2 + $0x4c] sm:$0xf]
    %v51 = vld [vmem:[#allocation2 + $0x50] sm:$0xf]
    %v52 = vld [vmem:[#allocation2 + $0x54] sm:$0xf]
    %v53 = vld [vmem:[#allocation2 + $0x58] sm:$0xf]
    %v54 = vld [vmem:[#allocation2 + $0x5c] sm:$0xf]
    %v55 = vld [vmem:[#allocation2 + $0x60] sm:$0xf]
    %v56 = vld [vmem:[#allocation2 + $0x64] sm:$0xf]
    %v57 = vld [vmem:[#allocation2 + $0x68] sm:$0xf]
    %v58 = vld [vmem:[#allocation2 + $0x6c] sm:$0xf]
    %v59 = vld [vmem:[#allocation2 + $0x70] sm:$0xf]
    %v60 = vld [vmem:[#allocation2 + $0x74] sm:$0xf]
    %v61 = vld [vmem:[#allocation2 + $0x78] sm:$0xf]
    %v62 = vld [vmem:[#allocation2 + $0x7c] sm:$0xf]
    %v63 = vld [vmem:[#allocation2 + $0x80] sm:$0xf]
    %v64 = vld [vmem:[#allocation2 + $0x84] sm:$0xf]
    %v65 = vld [vmem:[#allocation2 + $0x88] sm:$0xf]
    %v66 = vld [vmem:[#allocation2 + $0x8c] sm:$0xf]
    %v67 = vld [vmem:[%s2] sm:$0x1]
    %v68 = vld [vmem:[%s2 + $0x1] sm:$0x1]
    %v69 = vld [vmem:[%s2 + $0x2] sm:$0x1]
    %v70 = vlaneseq
    %v71 = vshrl.u32 %v70, 7
    %v72 = vsub.s32 0, %v71
    %v73 = vrot.slane %v67, %v72
    %v76 = vunpack.c.l.b16 %v29
    %v77 = vunpack.c.l.b16 %v30
    %v78 = vpack.c.b16 %v77, %v76
    %v83 = vunpack.c.l.b16 %v31
    %v84 = vunpack.c.l.b16 %v32
    %v85 = vunpack.c.l.b16 %v33
    %v86 = vunpack.c.l.b16 %v34
    %v87 = vpack.c.b16 %v84, %v83
    %v88 = vpack.c.b16 %v86, %v85
    %vm91 = vcmask 261120
    %v93 = vsel %vm91, %v78, 0
    %95 = vmatprep.subr.bf16.mxu0 0
    %96 = vmatpush1.bf16.msra.mxu0 0
    %97 = vmatprep.subr.bf16.mxu0 0
    %98 = vmatpush1.bf16.msra.mxu0 0
    %99 = vmatprep.subr.bf16.mxu0 0
    %100 = vmatpush1.bf16.msra.mxu0 0
    %101 = vmatprep.subr.bf16.mxu0 0
    %102 = vmatpush1.bf16.msra.mxu0 0
    %103 = vmatprep.subr.bf16.mxu0 0
    %104 = vmatpush1.bf16.msra.mxu0 0
    %105 = vmatprep.subr.bf16.mxu0 0
    %106 = vmatpush1.bf16.msra.mxu0 0
    %107 = vmatprep.subr.bf16.mxu0 0
    %108 = vmatpush1.bf16.msra.mxu0 %v88
    %109 = vmatprep.subr.bf16.mxu0 0
    %110 = vmatpush1.bf16.msra.mxu0 %v87
    %111 = vmatprep.subr.bf16.mxu0 0
    %112 = vmatpush2.bf16.msra.mxu0 0
    %113 = vmatprep.subr.bf16.mxu0 0
    %114 = vmatpush2.bf16.msra.mxu0 0
    %115 = vmatprep.subr.bf16.mxu0 0
    %116 = vmatpush2.bf16.msra.mxu0 0
    %117 = vmatprep.subr.bf16.mxu0 0
    %118 = vmatpush2.bf16.msra.mxu0 0
    %119 = vmatprep.subr.bf16.mxu0 0
    %120 = vmatpush2.bf16.msra.mxu0 0
    %121 = vmatprep.subr.bf16.mxu0 0
    %122 = vmatpush2.bf16.msra.mxu0 0
    %123 = vmatprep.subr.bf16.mxu0 0
    %124 = vmatpush2.bf16.msra.mxu0 0
    %125 = vmatprep.subr.bf16.mxu0 0
    %126 = vmatpush2.bf16.msra.mxu0 0
    %127 = vmatprep.mubr.bf16.mxu0 0
    %128 = vmatmul.mubr.bf16.gmra.mxu0 %v93
    %v129 = vpop.f32.mrf.mxu0
    %v130 = vadd.f32 %v73, %v129
    %v131 = vpop.f32.mrf.mxu0
    %v132 = vpop.f32.mrf.mxu0
    %v133 = vadd.f32 %v73, %v132
    %v134 = vpop.f32.mrf.mxu0
    %135 = vdwg.mxu0
    %v136 = vmax.f32 %v130, 0.0
    %v137 = vmax.f32 %v133, 0.0
    %v138 = vpack.c.bf16 %v137, %v136
    %v139 = vlaneseq
    %v140 = vshrl.u32 %v139, 7
    %v141 = vsub.s32 0, %v140
    %v142 = vrot.slane %v68, %v141
    %v159 = vunpack.c.l.b16 %v35
    %v160 = vunpack.c.l.b16 %v36
    %v161 = vunpack.c.l.b16 %v37
    %v162 = vunpack.c.l.b16 %v38
    %v163 = vunpack.c.l.b16 %v39
    %v164 = vunpack.c.l.b16 %v40
    %v165 = vunpack.c.l.b16 %v41
    %v166 = vunpack.c.l.b16 %v42
    %v167 = vunpack.c.l.b16 %v43
    %v168 = vunpack.c.l.b16 %v44
    %v169 = vunpack.c.l.b16 %v45
    %v170 = vunpack.c.l.b16 %v46
    %v171 = vunpack.c.l.b16 %v47
    %v172 = vunpack.c.l.b16 %v48
    %v173 = vunpack.c.l.b16 %v49
    %v174 = vunpack.c.l.b16 %v50
    %v175 = vpack.c.b16 %v160, %v159
    %v176 = vpack.c.b16 %v162, %v161
    %v177 = vpack.c.b16 %v164, %v163
    %v178 = vpack.c.b16 %v166, %v165
    %v179 = vpack.c.b16 %v168, %v167
    %v180 = vpack.c.b16 %v170, %v169
    %v181 = vpack.c.b16 %v172, %v171
    %v182 = vpack.c.b16 %v174, %v173
    %191 = vmatprep.subr.bf16.mxu0 0
    %192 = vmatpush1.bf16.msra.mxu0 %v182
    %193 = vmatprep.subr.bf16.mxu0 0
    %194 = vmatpush1.bf16.msra.mxu0 %v181
    %195 = vmatprep.subr.bf16.mxu0 0
    %196 = vmatpush1.bf16.msra.mxu0 %v180
    %197 = vmatprep.subr.bf16.mxu0 0
    %198 = vmatpush1.bf16.msra.mxu0 %v179
    %199 = vmatprep.subr.bf16.mxu0 0
    %200 = vmatpush1.bf16.msra.mxu0 %v178
    %201 = vmatprep.subr.bf16.mxu0 0
    %202 = vmatpush1.bf16.msra.mxu0 %v177
    %203 = vmatprep.subr.bf16.mxu0 0
    %204 = vmatpush1.bf16.msra.mxu0 %v176
    %205 = vmatprep.subr.bf16.mxu0 0
    %206 = vmatpush1.bf16.msra.mxu0 %v175
    %207 = vmatprep.subr.bf16.mxu0 0
    %208 = vmatpush2.bf16.msra.mxu0 0
    %209 = vmatprep.subr.bf16.mxu0 0
    %210 = vmatpush2.bf16.msra.mxu0 0
    %211 = vmatprep.subr.bf16.mxu0 0
    %212 = vmatpush2.bf16.msra.mxu0 0
    %213 = vmatprep.subr.bf16.mxu0 0
    %214 = vmatpush2.bf16.msra.mxu0 0
    %215 = vmatprep.subr.bf16.mxu0 0
    %216 = vmatpush2.bf16.msra.mxu0 0
    %217 = vmatprep.subr.bf16.mxu0 0
    %218 = vmatpush2.bf16.msra.mxu0 0
    %219 = vmatprep.subr.bf16.mxu0 0
    %220 = vmatpush2.bf16.msra.mxu0 0
    %221 = vmatprep.subr.bf16.mxu0 0
    %222 = vmatpush2.bf16.msra.mxu0 0
    %223 = vmatprep.mubr.bf16.mxu0 0
    %224 = vmatmul.mubr.bf16.gmra.mxu0 %v138
    %v225 = vpop.f32.mrf.mxu0
    %v226 = vadd.f32 %v142, %v225
    %v227 = vpop.f32.mrf.mxu0
    %v228 = vpop.f32.mrf.mxu0
    %v229 = vadd.f32 %v142, %v228
    %v230 = vpop.f32.mrf.mxu0
    %231 = vdwg.mxu0
    %v232 = vmax.f32 %v226, 0.0
    %v233 = vmax.f32 %v229, 0.0
    %v234 = vpack.c.bf16 %v233, %v232
    %v235 = vlaneseq
    %v236 = vshrl.u32 %v235, 7
    %v237 = vsub.s32 0, %v236
    %v238 = vrot.slane %v69, %v237
    %v255 = vunpack.c.l.b16 %v51
    %v256 = vunpack.c.l.b16 %v52
    %v257 = vunpack.c.l.b16 %v53
    %v258 = vunpack.c.l.b16 %v54
    %v259 = vunpack.c.l.b16 %v55
    %v260 = vunpack.c.l.b16 %v56
    %v261 = vunpack.c.l.b16 %v57
    %v262 = vunpack.c.l.b16 %v58
    %v263 = vunpack.c.l.b16 %v59
    %v264 = vunpack.c.l.b16 %v60
    %v265 = vunpack.c.l.b16 %v61
    %v266 = vunpack.c.l.b16 %v62
    %v267 = vunpack.c.l.b16 %v63
    %v268 = vunpack.c.l.b16 %v64
    %v269 = vunpack.c.l.b16 %v65
    %v270 = vunpack.c.l.b16 %v66
    %v271 = vpack.c.b16 %v256, %v255
    %v272 = vpack.c.b16 %v258, %v257
    %v273 = vpack.c.b16 %v260, %v259
    %v274 = vpack.c.b16 %v262, %v261
    %v275 = vpack.c.b16 %v264, %v263
    %v276 = vpack.c.b16 %v266, %v265
    %v277 = vpack.c.b16 %v268, %v267
    %v278 = vpack.c.b16 %v270, %v269
    %287 = vmatprep.subr.bf16.mxu0 0
    %288 = vmatpush1.bf16.msra.mxu0 %v278
    %289 = vmatprep.subr.bf16.mxu0 0
    %290 = vmatpush1.bf16.msra.mxu0 %v277
    %291 = vmatprep.subr.bf16.mxu0 0
    %292 = vmatpush1.bf16.msra.mxu0 %v276
    %293 = vmatprep.subr.bf16.mxu0 0
    %294 = vmatpush1.bf16.msra.mxu0 %v275
    %295 = vmatprep.subr.bf16.mxu0 0
    %296 = vmatpush1.bf16.msra.mxu0 %v274
    %297 = vmatprep.subr.bf16.mxu0 0
    %298 = vmatpush1.bf16.msra.mxu0 %v273
    %299 = vmatprep.subr.bf16.mxu0 0
    %300 = vmatpush1.bf16.msra.mxu0 %v272
    %301 = vmatprep.subr.bf16.mxu0 0
    %302 = vmatpush1.bf16.msra.mxu0 %v271
    %303 = vmatprep.subr.bf16.mxu0 0
    %304 = vmatpush2.bf16.msra.mxu0 0
    %305 = vmatprep.subr.bf16.mxu0 0
    %306 = vmatpush2.bf16.msra.mxu0 0
    %307 = vmatprep.subr.bf16.mxu0 0
    %308 = vmatpush2.bf16.msra.mxu0 0
    %309 = vmatprep.subr.bf16.mxu0 0
    %310 = vmatpush2.bf16.msra.mxu0 0
    %311 = vmatprep.subr.bf16.mxu0 0
    %312 = vmatpush2.bf16.msra.mxu0 0
    %313 = vmatprep.subr.bf16.mxu0 0
    %314 = vmatpush2.bf16.msra.mxu0 0
    %315 = vmatprep.subr.bf16.mxu0 0
    %316 = vmatpush2.bf16.msra.mxu0 0
    %317 = vmatprep.subr.bf16.mxu0 0
    %318 = vmatpush2.bf16.msra.mxu0 0
    %319 = vmatprep.mubr.bf16.mxu0 0
    %320 = vmatmul.mubr.bf16.gmra.mxu0 %v234
    %v321 = vpop.f32.mrf.mxu0
    %v322 = vadd.f32 %v238, %v321
    %v323 = vpop.f32.mrf.mxu0
    %v324 = vpop.f32.mrf.mxu0
    %v325 = vadd.f32 %v238, %v324
    %v326 = vpop.f32.mrf.mxu0
    %327 = vdwg.mxu0
    %328 = vst [vmem:[%s3] sm:$0xff] %v322
    %329 = vst [vmem:[%s3 + $0x8] sm:$0xff] %v325
    // Predicated region
    $region18: #{forward.1} parent=1 // pred_check
      _
    $region19: #{forward.1} parent=1 // pred_check_branch
      %331 = sbr.rel (0) target = $region21
    $region20: #{forward.1} parent=1 // pred_region
      _
    $region21: #{forward.1} parent=1 // pred_fallthru
      _
    // Predicated region
    $region22: #{forward.1} parent=1 // pred_check
      _
    $region23: #{forward.1} parent=1 // pred_check_branch
      %333 = sbr.rel (0) target = $region25
    $region24: #{forward.1} parent=1 // pred_region
      _
    $region25: #{forward.1} parent=1 // pred_fallthru
      _
    %334 = vsyncpa [#allocation3], 1

</llo_original>
